<compile_context>
chip_gen: v6e
topology: v6e:2x2x1
jax: 0.10.0
libtpu: 0.0.40
codegen_flags: <defaults>
</compile_context>

<pallas_src>
import jax
import jax.numpy as jnp
from jax.experimental import pallas as pl
from jax.experimental.pallas import tpu as pltpu

NUM_CLASSES = 20


def _cam_head_kernel(x_ref, w_ref, o_ref):
    # x_ref: (bn, C, t_hw) feature columns of bn batch elements
    # w_ref: (K, C)        classifier weight, resident across the whole grid
    # o_ref: (bn, K, t_hw) lane-dense output tile
    w = w_ref[...]
    for b in range(x_ref.shape[0]):  # bn is a static Python int -> unrolled
        o_ref[b] = jnp.dot(
            w, x_ref[b], preferred_element_type=jnp.float32
        ).astype(o_ref.dtype)


def _vmem_budget_bytes():
    """75% of this generation's VMEM capacity (headroom for Mosaic scratch)."""
    cap = None
    try:
        cap = getattr(pltpu.get_tpu_info(), "vmem_capacity_bytes", None)
    except Exception:
        cap = None
    if not cap:
        cap = 64 * 1024 * 1024  # conservative: v7x has 64 MiB per TensorCore
    return int(cap) * 3 // 4


def _plan_tiling(N, C, HW, K, itemsize, vmem_budget, max_tile_hw, min_grid_steps):
    """Pick (batch-per-step, H*W tile, #HW tiles) for a well-occupied pipeline."""
    # Per-step VMEM: double-buffered x and out tiles, plus the resident weight
    # (counted double-buffered once — no extra x2 on top).
    w_bytes = 2 * K * C * itemsize
    per_px = 2 * (C + K) * itemsize
    avail = max(vmem_budget - w_bytes, per_px)

    t_cap = min(avail // per_px, max_tile_hw)
    if HW <= t_cap:
        t_hw = HW                                  # full extent: always legal
    else:
        t_hw = max((t_cap // 128) * 128, 128)      # multiple of 128
    n_hw = pl.cdiv(HW, t_hw)

    # Batch several n per step only when one step already covers all of H*W
    # and the per-step payload is small (otherwise grid overhead dominates).
    bn = 1
    if n_hw == 1:
        for cand in (8, 4, 2):
            if (N % cand == 0
                    and cand * HW <= t_cap
                    and cand * C * HW * itemsize <= (4 << 20)):
                bn = cand
                break

    def total_steps(bn_, n_hw_):
        return pl.cdiv(N, bn_) * n_hw_

    # Guarantee enough grid steps for DMA/compute overlap (>= ~4 per core).
    while bn > 1 and total_steps(bn, n_hw) < min_grid_steps:
        bn //= 2
    if total_steps(bn, n_hw) < min_grid_steps and HW > 128:
        want = pl.cdiv(min_grid_steps, pl.cdiv(N, bn))
        t_new = max((pl.cdiv(HW, want) // 128) * 128, 128)
        if t_new < t_hw:
            t_hw = t_new
            n_hw = pl.cdiv(HW, t_hw)

    return bn, t_hw, n_hw


def cam_head(features_nchw, weight_kc11, *, max_tile_hw=2048,
             cast_to_bf16=False, min_grid_steps=8):
    """1x1 conv, no bias: F.conv2d(features, weight) with weight (K, C, 1, 1)."""
    N, C, H, W = features_nchw.shape
    K = weight_kc11.shape[0]
    HW = H * W
    out_dtype = features_nchw.dtype

    # Free reshapes only (contiguous trailing-dim merges): no transpose, no pad.
    x = features_nchw.reshape(N, C, HW)   # (N, C, HW)
    w = weight_kc11.reshape(K, C)         # (K, C)

    allow_fusion = None
    if cast_to_bf16:
        # Weight is tiny: cast it in the wrapper.  The feature cast is emitted
        # here too, but allow_input_fusion lets XLA fold it into the
        # pallas_call input DMA instead of materializing a bf16 copy in HBM.
        w = w.astype(jnp.bfloat16)
        x = x.astype(jnp.bfloat16)
        allow_fusion = [True, False]   # per-operand: fuse features, not weight

    itemsize = jnp.dtype(x.dtype).itemsize
    vmem_budget = _vmem_budget_bytes()
    bn, t_hw, n_hw = _plan_tiling(
        N, C, HW, K, itemsize, vmem_budget, max_tile_hw, min_grid_steps)
    n_grp = pl.cdiv(N, bn)

    x_block = (bn, C, t_hw)
    w_block = (K, C)
    o_block = (bn, K, t_hw)

    # Megacore (v7x): lead with the larger parallel axis so both TensorCores
    # get balanced work even for odd/tiny N.  No-op on single-core v5e/v6e.
    if n_hw >= n_grp:
        grid = (n_hw, n_grp)
        x_spec = pl.BlockSpec(x_block, lambda j, g: (g, 0, j))
        w_spec = pl.BlockSpec(w_block, lambda j, g: (0, 0))
        o_spec = pl.BlockSpec(o_block, lambda j, g: (g, 0, j))
    else:
        grid = (n_grp, n_hw)
        x_spec = pl.BlockSpec(x_block, lambda g, j: (g, 0, j))
        w_spec = pl.BlockSpec(w_block, lambda g, j: (0, 0))
        o_spec = pl.BlockSpec(o_block, lambda g, j: (g, 0, j))

    cost = pl.CostEstimate(
        flops=2 * N * HW * C * K,
        transcendentals=0,
        bytes_accessed=(N * C * HW + K * C) * itemsize
        + N * K * HW * jnp.dtype(out_dtype).itemsize,
    )

    out = pl.pallas_call(
        _cam_head_kernel,
        out_shape=jax.ShapeDtypeStruct((N, K, HW), out_dtype),
        grid=grid,
        in_specs=[x_spec, w_spec],
        out_specs=o_spec,
        compiler_params=pltpu.CompilerParams(
            dimension_semantics=("parallel", "parallel"),
            vmem_limit_bytes=int(vmem_budget),
            allow_input_fusion=allow_fusion,
        ),
        cost_estimate=cost,
    )(x, w)

    return out.reshape(N, K, H, W)  # NCHW, matches F.conv2d output


class CAM:
    """JAX/Pallas counterpart of the PyTorch CAM module's forward."""

    def __init__(self, key, in_channels, num_classes=NUM_CLASSES):
        k1, k2 = jax.random.split(key)
        # nn.Conv2d(2048, 20, 1, bias=False) weights, shape (K, C, 1, 1);
        # deterministic synthetic init (this is not a checkpoint load).
        self.spotlight_classifier_weight = 0.01 * jax.random.normal(
            k1, (num_classes, in_channels, 1, 1), jnp.float32
        )
        self.compensation_classifier_weight = 0.01 * jax.random.normal(
            k2, (num_classes, in_channels, 1, 1), jnp.float32
        )

    def __call__(self, features, step=1):
        # TODO(synk): the ResNet50 backbone stages (external `resnet50` module,
        # pretrained, strides=(2,2,2,1), use_amm variant) have no in-file
        # definition and are not reproduced; `features` is the stage-4 feature
        # map (NCHW) that feeds the classifier conv.
        if step == 1:
            return cam_head(features, self.spotlight_classifier_weight)
        elif step == 2:
            return cam_head(features, self.compensation_classifier_weight)
        else:
            raise ValueError("step must be 1 or 2")


if __name__ == "__main__":
    key = jax.random.PRNGKey(0)
    k_feat, k_params = jax.random.split(key)

    # Small synthetic shapes: batch=2, channels=256 (scaled stand-in for 2048),
    # spatial=16x16 (stride-16 feature map of a 256x256 image).
    N, C, H, W = 2, 256, 16, 16
    features = jax.random.normal(k_feat, (N, C, H, W), jnp.float32)

    model = CAM(k_params, in_channels=C)

    cam1 = model(features, step=1)
    cam2 = model(features, step=2)
    jax.block_until_ready((cam1, cam2))

    # Reference check against plain-JAX 1x1 conv (einsum over channels).
    ref1 = jnp.einsum(
        "nchw,kc->nkhw", features, model.spotlight_classifier_weight[:, :, 0, 0]
    )
    ref2 = jnp.einsum(
        "nchw,kc->nkhw", features, model.compensation_classifier_weight[:, :, 0, 0]
    )
    assert cam1.shape == (N, NUM_CLASSES, H, W)
    assert cam2.shape == (N, NUM_CLASSES, H, W)
    assert jnp.allclose(cam1, ref1, atol=1e-4, rtol=1e-4)
    assert jnp.allclose(cam2, ref2, atol=1e-4, rtol=1e-4)

    # bf16 bandwidth path (feature cast fuses into the pallas_call input via
    # allow_input_fusion); looser tolerance since the contraction runs in bf16.
    cam1_bf16 = cam_head(
        features, model.spotlight_classifier_weight, cast_to_bf16=True
    )
    jax.block_until_ready(cam1_bf16)
    assert cam1_bf16.shape == (N, NUM_CLASSES, H, W)
    assert jnp.allclose(cam1_bf16, ref1, atol=5e-2, rtol=5e-2)

    print("KERNEL_OK")
</pallas_src>

<mosaic_0001>
module attributes {stable_mosaic.version = 11 : i64} {
  func.func @_cam_head_kernel(%arg0: i32, %arg1: i32, %arg2: memref<1x256x128xf32, #tpu.memory_space<vmem>>, %arg3: memref<20x256xf32, #tpu.memory_space<vmem>>, %arg4: memref<1x20x128xf32, #tpu.memory_space<vmem>>) attributes {dimension_semantics = [#tpu.dimension_semantics<parallel>, #tpu.dimension_semantics<parallel>], iteration_bounds = array<i64: 2, 2>, scalar_prefetch = 0 : i64, scratch_operands = 0 : i64, tpu.core_type = #tpu.core_type<tc>, window_params = [{transform_indices = @transform_0, window_bounds = array<i64: 1, 256, 128>}, {pipeline_mode = #tpu.pipeline_mode<synchronous>, transform_indices = @transform_1, window_bounds = array<i64: 20, 256>}, {transform_indices = @transform_2, window_bounds = array<i64: 1, 20, 128>}]} {
    %c0 = arith.constant 0 : index
    %c0_0 = arith.constant 0 : index
    %0 = vector.load %arg3[%c0, %c0_0] : memref<20x256xf32, #tpu.memory_space<vmem>>, vector<20x256xf32>
    %c0_1 = arith.constant 0 : index
    %c0_2 = arith.constant 0 : index
    %c0_3 = arith.constant 0 : index
    %1 = vector.load %arg2[%c0_1, %c0_2, %c0_3] : memref<1x256x128xf32, #tpu.memory_space<vmem>>, vector<1x256x128xf32>
    %2 = vector.shape_cast %1 : vector<1x256x128xf32> to vector<256x128xf32>
    %cst = arith.constant dense<0.000000e+00> : vector<20x128xf32>
    %3 = tpu.matmul %0, %2, %cst {dimension_numbers = #tpu.dot_dimension_numbers<[1], [0], [0], [1], [0, 0, 1, 1], [], []>} : vector<20x256xf32>, vector<256x128xf32>, vector<20x128xf32> -> vector<20x128xf32>
    %c0_4 = arith.constant 0 : index
    %c0_5 = arith.constant 0 : index
    %c0_6 = arith.constant 0 : index
    %4 = vector.load %arg4[%c0_4, %c0_5, %c0_6] : memref<1x20x128xf32, #tpu.memory_space<vmem>>, vector<1x20x128xf32>
    %5 = vector.shape_cast %4 : vector<1x20x128xf32> to vector<20x128xf32>
    %6 = vector.shape_cast %3 : vector<20x128xf32> to vector<1x20x128xf32>
    tpu.vector_store %arg4[%c0_4, %c0_5, %c0_6], %6 {strides = array<i32>} : memref<1x20x128xf32, #tpu.memory_space<vmem>>, vector<1x20x128xf32>,
    return
  }
  func.func @transform_0(%arg0: i32, %arg1: i32) -> (i32, i32, i32) {
    %c0_i32 = arith.constant 0 : i32
    %c0_i32_0 = arith.constant 0 : i32
    return %arg1, %c0_i32, %arg0 : i32, i32, i32
  }
  func.func @transform_1(%arg0: i32, %arg1: i32) -> (i32, i32) {
    %c0_i32 = arith.constant 0 : i32
    %c0_i32_0 = arith.constant 0 : i32
    %c0_i32_1 = arith.constant 0 : i32
    return %c0_i32, %c0_i32_0 : i32, i32
  }
  func.func @transform_2(%arg0: i32, %arg1: i32) -> (i32, i32, i32) {
    %c0_i32 = arith.constant 0 : i32
    %c0_i32_0 = arith.constant 0 : i32
    return %arg1, %c0_i32, %arg0 : i32, i32, i32
  }
}

</mosaic_0001>

<llo_original>
// kernel: tpu_custom_call.1
$region0: #{tpu_custom_call.1}
  #allocation0 [shape = 'u32[]', space=smem, size = 0x4, offset = 0x4, fixed_abs, tag = 'smem constant byte address 0x4 - core index']
  #allocation1 [shape = 'u32[144,128]{1,0:T(1,128)}', space=vmem, size = 0x12000, scoped, tag = 'internal scratch']
  %s0 = inlined_call_operand.hbm [shape: f32[2,256,256], index: 0, kind: input, shape index: {}]
  %s1 = inlined_call_operand.hbm [shape: f32[20,256], index: 1, kind: input, shape index: {}]
  %s2 = inlined_call_operand.vmem [shape: f32[2,20,256], index: 2, kind: output, shape index: {}]
  %s3 = sld [smem:[#allocation0]]
  $region83: #{tpu_custom_call.1} parent=0
    _
  %s5 = ssub.s32 1, %s3
  %s6 = scalar_select 0, %s5, %s3
  $region1: #{tpu_custom_call.1} parent=0
    #allocation2 [shape = 'u8[262144]{0}', space=vmem, size = 0x40000, scoped, tag = 'input window, operand 0']
    #allocation3 [shape = 's32[2]{0}', space=sflag, size = 0x8, scoped, tag = 'scoped memory for tpu_custom_call.1']
    #allocation4 [shape = 'u8[24576]{0}', space=vmem, size = 0x6000, scoped, tag = 'input window, operand 1, single buffered']
    #allocation5 [shape = 's32[1]{0}', space=sflag, size = 0x4, scoped, tag = 'scoped memory for tpu_custom_call.1']
    #allocation6 [shape = 'u8[24576]{0}', space=vmem, size = 0x6000, scoped, tag = 'output window, operand 0']
    %7 = vsyncpa [#allocation3], 0
    %s8 = scalar_lea.sflag [#allocation3], 1
    %9 = vsyncpa %s8, 0
    %10 = vsyncpa [#allocation5], 0
    loop: start=0, step=1, limit=6
    $region2: #{tpu_custom_call.1} parent=1 // loop_pre_header
      _
    $region3: #{tpu_custom_call.1} parent=1 // loop_header
      %s12 = sphi 0, %s16
      %p13 = scmp.ge.s32.totalorder %s12, 6
      %s19 = sphi 0, %s31
      %s20 = sphi 0, %s27
      %s21 = sphi 0, %s19
      %s22 = sphi 0, %s20
      %s23 = sphi 0, %s21
      %s24 = sphi 0, %s22
      %s36 = sphi 0, %s38
      %s39 = sphi 0, %s36
      %s40 = sphi 0, %s39
      %s56 = sphi 0, %s40
      %s60 = sphi 0, %s60
      %s62 = sphi 0, %s60
      %s63 = sphi 0, %s62
      %s77 = sphi 0, %s63
      %s85 = sphi 0, %s87
      %s88 = sphi 0, %s85
      %s89 = sphi 0, %s88
      %s105 = sphi 0, %s89
    $region4: #{tpu_custom_call.1} parent=1 // loop_header_branch
      %15 = sbr.rel (%p13) target = $region8
    $region5: #{tpu_custom_call.1} parent=1 // loop_body
      %s17 = ssub.s32 %s12, 1
      %s18 = ssub.s32 %s12, 2
      %s25 = sadd.s32 1, %s20
      %p26 = scmp.ge.s32.totalorder %s25, 2
      %s27 = scalar_select %p26, 0, %s25
      %s28 = sadd.s32 1, %s19
      %s29 = scalar_select %p26, %s28, %s19
      %p30 = scmp.ge.s32.totalorder %s29, 2
      %s31 = scalar_select %p30, 0, %s29
      %s32 = ssub.s32 %s20, %s27
      %s33 = ssub.s32 %s19, %s31
      %s34 = sor.u32 %s32, %s33
      %p35 = scmp.eq.s32.totalorder %s34, 0
      %s37 = sadd.s32 %s36, 1
      %s38 = scalar_select %p35, %s36, %s37
      %p41 = pneg %p35
      %p42 = scmp.eq.s32.totalorder %s12, 3
      %p43 = por %p41, %p42
      %p44 = scmp.ne.s32.totalorder %s36, %s39
      %p45 = scmp.eq.s32.totalorder %s12, 0
      %p46 = por %p44, %p45
      %p47 = scmp.ne.s32.totalorder %s36, %s39
      %p48 = scmp.eq.s32.totalorder %s17, 3
      %p49 = por %p47, %p48
      %p50 = scmp.ne.s32.totalorder %s39, %s40
      %p51 = scmp.eq.s32.totalorder %s17, 0
      %p52 = por %p50, %p51
      %p53 = scmp.ne.s32.totalorder %s39, %s40
      %p54 = scmp.eq.s32.totalorder %s18, 3
      %p55 = por %p53, %p54
      %p57 = scmp.ne.s32.totalorder %s40, %s56
      %p58 = scmp.eq.s32.totalorder %s18, 0
      %p59 = por %p57, %p58
      %s61 = sadd.s32 %s60, 1
      %p64 = scmp.eq.s32.totalorder %s12, 3
      %p65 = scmp.ne.s32.totalorder %s60, %s62
      %p66 = scmp.eq.s32.totalorder %s12, 0
      %p67 = por %p65, %p66
      %p68 = scmp.ne.s32.totalorder %s60, %s62
      %p69 = scmp.eq.s32.totalorder %s17, 3
      %p70 = por %p68, %p69
      %p71 = scmp.ne.s32.totalorder %s62, %s63
      %p72 = scmp.eq.s32.totalorder %s17, 0
      %p73 = por %p71, %p72
      %p74 = scmp.ne.s32.totalorder %s62, %s63
      %p75 = scmp.eq.s32.totalorder %s18, 3
      %p76 = por %p74, %p75
      %p78 = scmp.ne.s32.totalorder %s63, %s77
      %p79 = scmp.eq.s32.totalorder %s18, 0
      %p80 = por %p78, %p79
      %s81 = ssub.s32 %s20, %s27
      %s82 = ssub.s32 %s19, %s31
      %s83 = sor.u32 %s81, %s82
      %p84 = scmp.eq.s32.totalorder %s83, 0
      %s86 = sadd.s32 %s85, 1
      %s87 = scalar_select %p84, %s85, %s86
      %p90 = pneg %p84
      %p91 = scmp.eq.s32.totalorder %s12, 3
      %p92 = por %p90, %p91
      %p93 = scmp.ne.s32.totalorder %s85, %s88
      %p94 = scmp.eq.s32.totalorder %s12, 0
      %p95 = por %p93, %p94
      %p96 = scmp.ne.s32.totalorder %s85, %s88
      %p97 = scmp.eq.s32.totalorder %s17, 3
      %p98 = por %p96, %p97
      %p99 = scmp.ne.s32.totalorder %s88, %s89
      %p100 = scmp.eq.s32.totalorder %s17, 0
      %p101 = por %p99, %p100
      %p102 = scmp.ne.s32.totalorder %s88, %s89
      %p103 = scmp.eq.s32.totalorder %s18, 3
      %p104 = por %p102, %p103
      %p106 = scmp.ne.s32.totalorder %s89, %s105
      %p107 = scmp.eq.s32.totalorder %s18, 0
      %p108 = por %p106, %p107
      %p109 = scmp.le.s32.totalorder 1, %s12
      %p110 = scmp.lt.s32.totalorder %s12, 5
      %p111 = pnand %p109, %p110
      %p112 = pneg %p111
      // Predicated region
      $region9: #{tpu_custom_call.1} parent=5 // pred_check
        _
      $region10: #{tpu_custom_call.1} parent=5 // pred_check_branch
        %114 = sbr.rel (%p111) target = $region12
      $region11: #{tpu_custom_call.1} parent=5 // pred_region
        %s115 = ssub.s32 %s12, 1
        // Predicated region
        $region13: #{tpu_custom_call.1} parent=11 // pred_check
          %p116 = pneg %p73
        $region14: #{tpu_custom_call.1} parent=11 // pred_check_branch
          %118 = sbr.rel (%p116) target = $region16
        $region15: #{tpu_custom_call.1} parent=11 // pred_region
          %s120 = ssub.s32 768, 768
          %121 = vsyncadd [#allocation5], %s120
          %s122 = sshll.u32 [#allocation4], 4
          %s123 = int_to_ptr.vmem [resolvable:$true] %s122
          %128 = dma.hbm_to_vmem [thread:$0]  %s1, 768, %s123, [#allocation5], 256, 256, 16
        $region16: #{tpu_custom_call.1} parent=11 // pred_fallthru
          _
      $region12: #{tpu_custom_call.1} parent=5 // pred_fallthru
        _
      %p129 = scmp.lt.s32.totalorder %s12, 4
      // Predicated region
      $region17: #{tpu_custom_call.1} parent=5 // pred_check
        %p130 = pneg %p129
      $region18: #{tpu_custom_call.1} parent=5 // pred_check_branch
        %132 = sbr.rel (%p130) target = $region20
      $region19: #{tpu_custom_call.1} parent=5 // pred_region
        // Predicated region
        $region21: #{tpu_custom_call.1} parent=19 // pred_check
          %p133 = pneg %p46
        $region22: #{tpu_custom_call.1} parent=19 // pred_check_branch
          %135 = sbr.rel (%p133) target = $region24
        $region23: #{tpu_custom_call.1} parent=19 // pred_region
          %s136 = sand.u32 %s36, 1
          %s137 = scalar_lea.sflag [#allocation3], %s136
          %s138 = sand.u32 %s36, 1
          %s139 = smul.addr %s138, 256
          %s140 = scalar_lea.vmem [#allocation2], %s139
          %s142 = ssub.s32 4096, 4096
          %143 = vsyncadd %s137, %s142
          %s144 = smul.addr %s20, 64
          %s145 = sadd.s32 %s19, %s144
          %s146 = smul.addr %s145, 128
          %s147 = scalar_lea.hbm %s0, %s146
          %s148 = sshll.u32 %s140, 4
          %s149 = int_to_ptr.vmem [resolvable:$true] %s148
          %154 = dma.hbm_to_vmem [thread:$0]  %s147, 4096, %s149, %s137, 256, 128, 8
        $region24: #{tpu_custom_call.1} parent=19 // pred_fallthru
          _
      $region20: #{tpu_custom_call.1} parent=5 // pred_fallthru
        _
      %p155 = scmp.le.s32.totalorder 1, %s12
      %p156 = scmp.lt.s32.totalorder %s12, 5
      %p157 = pnand %p155, %p156
      %p158 = pneg %p157
      // Predicated region
      $region25: #{tpu_custom_call.1} parent=5 // pred_check
        _
      $region26: #{tpu_custom_call.1} parent=5 // pred_check_branch
        %160 = sbr.rel (%p157) target = $region28
      $region27: #{tpu_custom_call.1} parent=5 // pred_region
        %s161 = ssub.s32 %s12, 1
        %s162 = sand.u32 %s39, 1
        %s163 = scalar_lea.sflag [#allocation3], %s162
        %s164 = sand.u32 %s39, 1
        %s165 = smul.addr %s164, 256
        %s166 = scalar_lea.vmem [#allocation2], %s165
        // Predicated region
        $region29: #{tpu_custom_call.1} parent=27 // pred_check
          %p167 = pneg %p52
        $region30: #{tpu_custom_call.1} parent=27 // pred_check_branch
          %169 = sbr.rel (%p167) target = $region32
        $region31: #{tpu_custom_call.1} parent=27 // pred_region
          %170 = dma.done %s163, 4096
        $region32: #{tpu_custom_call.1} parent=27 // pred_fallthru
          _
        // Predicated region
        $region33: #{tpu_custom_call.1} parent=27 // pred_check
          %p171 = pneg %p73
        $region34: #{tpu_custom_call.1} parent=27 // pred_check_branch
          %173 = sbr.rel (%p171) target = $region36
        $region35: #{tpu_custom_call.1} parent=27 // pred_region
          %174 = dma.done [#allocation5], 768
        $region36: #{tpu_custom_call.1} parent=27 // pred_fallthru
          _
        %s175 = sand.u32 %s39, 1
        %s176 = scalar_lea.sflag [#allocation3], %s175
        %s177 = sand.u32 %s39, 1
        %s178 = smul.addr %s177, 256
        %s179 = scalar_lea.vmem [#allocation2], %s178
        %p180 = pneg %p52
        %p181 = pneg %p49
        %p182 = pneg %p73
        %p183 = pneg %p70
        %p184 = pneg %p101
        %p185 = pneg %p98
        %s186 = sand.u32 %s88, 1
        %s187 = sand.u32 %s88, 1
        %s188 = smul.addr %s187, 24
        %s189 = scalar_lea.vmem [#allocation6], %s188
        %v190 = vld [vmem:[#allocation4] sm:$0xff]
        %v191 = vld [vmem:[#allocation4 + $0x8] sm:$0xff]
        %v192 = vld [vmem:[#allocation4 + $0x10] sm:$0xff]
        %v193 = vld [vmem:[#allocation4 + $0x18] sm:$0xff]
        %v194 = vld [vmem:[#allocation4 + $0x20] sm:$0xf]
        %v195 = vld [vmem:[#allocation4 + $0x28] sm:$0xf]
        %v196 = vld [vmem:[%s166] sm:$0xff]
        %v197 = vld [vmem:[%s166 + $0x8] sm:$0xff]
        %v198 = vld [vmem:[%s166 + $0x10] sm:$0xff]
        %v199 = vld [vmem:[%s166 + $0x18] sm:$0xff]
        %v200 = vld [vmem:[%s166 + $0x20] sm:$0xff]
        %v201 = vld [vmem:[%s166 + $0x28] sm:$0xff]
        %v202 = vld [vmem:[%s166 + $0x30] sm:$0xff]
        %v203 = vld [vmem:[%s166 + $0x38] sm:$0xff]
        %v204 = vld [vmem:[%s166 + $0x40] sm:$0xff]
        %v205 = vld [vmem:[%s166 + $0x48] sm:$0xff]
        %v206 = vld [vmem:[%s166 + $0x50] sm:$0xff]
        %v207 = vld [vmem:[%s166 + $0x58] sm:$0xff]
        %v208 = vld [vmem:[%s166 + $0x60] sm:$0xff]
        %v209 = vld [vmem:[%s166 + $0x68] sm:$0xff]
        %v210 = vld [vmem:[%s166 + $0x70] sm:$0xff]
        %v211 = vld [vmem:[%s166 + $0x78] sm:$0xff]
        %v212 = vld [vmem:[%s166 + $0x80] sm:$0xff]
        %v213 = vld [vmem:[%s166 + $0x88] sm:$0xff]
        %v214 = vld [vmem:[%s166 + $0x90] sm:$0xff]
        %v215 = vld [vmem:[%s166 + $0x98] sm:$0xff]
        %v216 = vld [vmem:[%s166 + $0xa0] sm:$0xff]
        %v217 = vld [vmem:[%s166 + $0xa8] sm:$0xff]
        %v218 = vld [vmem:[%s166 + $0xb0] sm:$0xff]
        %v219 = vld [vmem:[%s166 + $0xb8] sm:$0xff]
        %v220 = vld [vmem:[%s166 + $0xc0] sm:$0xff]
        %v221 = vld [vmem:[%s166 + $0xc8] sm:$0xff]
        %v222 = vld [vmem:[%s166 + $0xd0] sm:$0xff]
        %v223 = vld [vmem:[%s166 + $0xd8] sm:$0xff]
        %v224 = vld [vmem:[%s166 + $0xe0] sm:$0xff]
        %v225 = vld [vmem:[%s166 + $0xe8] sm:$0xff]
        %v226 = vld [vmem:[%s166 + $0xf0] sm:$0xff]
        %v227 = vld [vmem:[%s166 + $0xf8] sm:$0xff]
        %228 = vmatprep.subr.mxu0 0.0
        %229 = vmatpush1.msra.mxu0 %v211
        %230 = vmatprep.subr.mxu0 0.0
        %231 = vmatpush1.msra.mxu0 %v210
        %232 = vmatprep.subr.mxu0 0.0
        %233 = vmatpush1.msra.mxu0 %v209
        %234 = vmatprep.subr.mxu0 0.0
        %235 = vmatpush1.msra.mxu0 %v208
        %236 = vmatprep.subr.mxu0 0.0
        %237 = vmatpush1.msra.mxu0 %v207
        %238 = vmatprep.subr.mxu0 0.0
        %239 = vmatpush1.msra.mxu0 %v206
        %240 = vmatprep.subr.mxu0 0.0
        %241 = vmatpush1.msra.mxu0 %v205
        %242 = vmatprep.subr.mxu0 0.0
        %243 = vmatpush1.msra.mxu0 %v204
        %244 = vmatprep.subr.mxu0 0.0
        %245 = vmatpush1.msra.mxu0 %v203
        %246 = vmatprep.subr.mxu0 0.0
        %247 = vmatpush1.msra.mxu0 %v202
        %248 = vmatprep.subr.mxu0 0.0
        %249 = vmatpush1.msra.mxu0 %v201
        %250 = vmatprep.subr.mxu0 0.0
        %251 = vmatpush1.msra.mxu0 %v200
        %252 = vmatprep.subr.mxu0 0.0
        %253 = vmatpush1.msra.mxu0 %v199
        %254 = vmatprep.subr.mxu0 0.0
        %255 = vmatpush1.msra.mxu0 %v198
        %256 = vmatprep.subr.mxu0 0.0
        %257 = vmatpush1.msra.mxu0 %v197
        %258 = vmatprep.subr.mxu0 0.0
        %259 = vmatpush1.msra.mxu0 %v196
        %260 = vmatprep.subr.mxu0 0.0
        %261 = vmatpush2.msra.mxu0 %v227
        %262 = vmatprep.subr.mxu0 0.0
        %263 = vmatpush2.msra.mxu0 %v226
        %264 = vmatprep.subr.mxu0 0.0
        %265 = vmatpush2.msra.mxu0 %v225
        %266 = vmatprep.subr.mxu0 0.0
        %267 = vmatpush2.msra.mxu0 %v224
        %268 = vmatprep.subr.mxu0 0.0
        %269 = vmatpush2.msra.mxu0 %v223
        %270 = vmatprep.subr.mxu0 0.0
        %271 = vmatpush2.msra.mxu0 %v222
        %272 = vmatprep.subr.mxu0 0.0
        %273 = vmatpush2.msra.mxu0 %v221
        %274 = vmatprep.subr.mxu0 0.0
        %275 = vmatpush2.msra.mxu0 %v220
        %276 = vmatprep.subr.mxu0 0.0
        %277 = vmatpush2.msra.mxu0 %v219
        %278 = vmatprep.subr.mxu0 0.0
        %279 = vmatpush2.msra.mxu0 %v218
        %280 = vmatprep.subr.mxu0 0.0
        %281 = vmatpush2.msra.mxu0 %v217
        %282 = vmatprep.subr.mxu0 0.0
        %283 = vmatpush2.msra.mxu0 %v216
        %284 = vmatprep.subr.mxu0 0.0
        %285 = vmatpush2.msra.mxu0 %v215
        %286 = vmatprep.subr.mxu0 0.0
        %287 = vmatpush2.msra.mxu0 %v214
        %288 = vmatprep.subr.mxu0 0.0
        %289 = vmatpush2.msra.mxu0 %v213
        %290 = vmatprep.subr.mxu0 0.0
        %291 = vmatpush2.msra.mxu0 %v212
        %292 = vmatprep.mubr.f32.mxu0 %v191
        %293 = vmatmul.mubr.f32.gmra.mxu0 %v190
        %v294 = vpop.f32.mrf.mxu0
        %v295 = vadd.f32 0.0, %v294
        %v296 = vpop.f32.mrf.mxu0
        %297 = vmatprep.mubr.f32.mxu0 %v193
        %298 = vmatmul.mubr.f32.gmra.mxu0 %v192
        %v299 = vpop.f32.mrf.mxu0
        %v300 = vadd.f32 0.0, %v299
        %v301 = vpop.f32.mrf.mxu0
        %302 = vmatprep.mubr.f32.mxu0 %v195
        %303 = vmatmul.mubr.f32.gmra.mxu0 %v194
        %v304 = vpop.f32.mrf.mxu0
        %v305 = vadd.f32 0.0, %v304
        %v306 = vpop.f32.mrf.mxu0
        %307 = vdwg.mxu0
        %308 = vst [vmem:[%s189] sm:$0xff] %v295
        %309 = vst [vmem:[%s189 + $0x8] sm:$0xff] %v300
        %310 = vst [vmem:[%s189 + $0x10] sm:$0xf] %v305
        %s311 = sand.u32 %s88, 1
        %s312 = sand.u32 %s88, 1
        %s313 = smul.addr %s312, 24
        %s314 = scalar_lea.vmem [#allocation6], %s313
        // Predicated region
        $region37: #{tpu_custom_call.1} parent=27 // pred_check
          %p315 = pneg %p98
        $region38: #{tpu_custom_call.1} parent=27 // pred_check_branch
          %317 = sbr.rel (%p315) target = $region40
        $region39: #{tpu_custom_call.1} parent=27 // pred_region
          %s318 = smul.addr %s22, 6
          %s319 = sadd.s32 %s21, %s318
          %s320 = smul.addr %s319, 8
          %s321 = scalar_lea.vmem %s2, %s320
          // Predicated region
          $region41: #{tpu_custom_call.1} parent=39 // pred_check
            _
          $region42: #{tpu_custom_call.1} parent=39 // pred_check_branch
            %323 = sbr.rel (0) target = $region44
          $region43: #{tpu_custom_call.1} parent=39 // pred_region
            // Predicated region
            $region45: #{tpu_custom_call.1} parent=43 // pred_check
              _
            $region46: #{tpu_custom_call.1} parent=43 // pred_check_branch
              %325 = sbr.rel (0) target = $region48
            $region47: #{tpu_custom_call.1} parent=43 // pred_region
              // Predicated region
              $region60: #{tpu_custom_call.1} parent=47 // pred_check
                _
              $region61: #{tpu_custom_call.1} parent=47 // pred_check_branch
                %345 = sbr.rel (0) target = $region63
              $region62: #{tpu_custom_call.1} parent=47 // pred_region
                loop: start=0, step=1, limit=1
                $region64: #{tpu_custom_call.1} parent=62 // loop_pre_header
                  _
                $region65: #{tpu_custom_call.1} parent=62 // loop_header
                  %s347 = sphi 0, %s351
                  %p348 = scmp.ge.s32.totalorder %s347, 1
                  %s352 = sphi %s314, %s314
                  %s353 = sphi %s321, %s321
                $region66: #{tpu_custom_call.1} parent=62 // loop_header_branch
                  %350 = sbr.rel (%p348) target = $region70
                $region67: #{tpu_custom_call.1} parent=62 // loop_body
                  %v354 = vld [vmem:[%s352] sm:$0xff]
                  %355 = vst [vmem:[%s353] sm:$0xff] %v354
                  %v356 = vld [vmem:[%s352 + $0x8] sm:$0xff]
                  %357 = vst [vmem:[%s353 + $0x10] sm:$0xff] %v356
                  %v358 = vld [vmem:[%s352 + $0x10] sm:$0xff]
                  %359 = vst [vmem:[%s353 + $0x20] sm:$0xff] %v358
                $region68: #{tpu_custom_call.1} parent=62 // loop_footer
                  %s351 = sadd.s32 1, %s347
                $region69: #{tpu_custom_call.1} parent=62 // loop_footer_branch
                  %346 = sbr.rel target = $region65
                $region70: #{tpu_custom_call.1} parent=62 // loop_exit
                  _
              $region63: #{tpu_custom_call.1} parent=47 // pred_fallthru
                _
              // Predicated region
              $region71: #{tpu_custom_call.1} parent=47 // pred_check
                _
              $region72: #{tpu_custom_call.1} parent=47 // pred_check_branch
                %361 = sbr.rel target = $region74
              $region73: #{tpu_custom_call.1} parent=47 // pred_region
                _
              $region74: #{tpu_custom_call.1} parent=47 // pred_fallthru
                _
            $region48: #{tpu_custom_call.1} parent=43 // pred_fallthru
              _
            // Predicated region
            $region49: #{tpu_custom_call.1} parent=43 // pred_check
              _
            $region50: #{tpu_custom_call.1} parent=43 // pred_check_branch
              %327 = sbr.rel target = $region52
            $region51: #{tpu_custom_call.1} parent=43 // pred_region
              %s329 = ssub.s32 256, 1
              loop: start=0, step=1, limit=1
              $region53: #{tpu_custom_call.1} parent=51 // loop_pre_header
                _
              $region54: #{tpu_custom_call.1} parent=51 // loop_header
                %s331 = sphi 0, %s335
                %p332 = scmp.ge.s32.totalorder %s331, 1
                %s336 = sphi %s314, %s314
                %s337 = sphi %s321, %s321
              $region55: #{tpu_custom_call.1} parent=51 // loop_header_branch
                %334 = sbr.rel (%p332) target = $region59
              $region56: #{tpu_custom_call.1} parent=51 // loop_body
                %v338 = vld [vmem:[%s336] sm:%s329]
                %339 = vst [vmem:[%s337] sm:%s329] %v338
                %v340 = vld [vmem:[%s336 + $0x8] sm:%s329]
                %341 = vst [vmem:[%s337 + $0x10] sm:%s329] %v340
                %v342 = vld [vmem:[%s336 + $0x10] sm:%s329]
                %343 = vst [vmem:[%s337 + $0x20] sm:%s329] %v342
              $region57: #{tpu_custom_call.1} parent=51 // loop_footer
                %s335 = sadd.s32 1, %s331
              $region58: #{tpu_custom_call.1} parent=51 // loop_footer_branch
                %330 = sbr.rel target = $region54
              $region59: #{tpu_custom_call.1} parent=51 // loop_exit
                _
            $region52: #{tpu_custom_call.1} parent=43 // pred_fallthru
              _
          $region44: #{tpu_custom_call.1} parent=39 // pred_fallthru
            _
          %362 = vnop
        $region40: #{tpu_custom_call.1} parent=27 // pred_fallthru
          _
      $region28: #{tpu_custom_call.1} parent=5 // pred_fallthru
        _
      %p363 = scmp.le.s32.totalorder 2, %s12
      // Predicated region
      $region75: #{tpu_custom_call.1} parent=5 // pred_check
        %p364 = pneg %p363
      $region76: #{tpu_custom_call.1} parent=5 // pred_check_branch
        %366 = sbr.rel (%p364) target = $region78
      $region77: #{tpu_custom_call.1} parent=5 // pred_region
        %s367 = ssub.s32 %s12, 2
        // Predicated region
        $region79: #{tpu_custom_call.1} parent=77 // pred_check
          %p368 = pneg %p104
        $region80: #{tpu_custom_call.1} parent=77 // pred_check_branch
          %370 = sbr.rel (%p368) target = $region82
        $region81: #{tpu_custom_call.1} parent=77 // pred_region
          %s371 = sand.u32 %s89, 1
          %s372 = sand.u32 %s89, 1
          %s373 = smul.addr %s372, 24
          %s374 = scalar_lea.vmem [#allocation6], %s373
        $region82: #{tpu_custom_call.1} parent=77 // pred_fallthru
          _
      $region78: #{tpu_custom_call.1} parent=5 // pred_fallthru
        _
    $region6: #{tpu_custom_call.1} parent=1 // loop_footer
      %s16 = sadd.s32 1, %s12
    $region7: #{tpu_custom_call.1} parent=1 // loop_footer_branch
      %11 = sbr.rel target = $region3
    $region8: #{tpu_custom_call.1} parent=1 // loop_exit
      _
    %375 = vsyncpa [#allocation3], 1
    %s376 = scalar_lea.sflag [#allocation3], 1
    %377 = vsyncpa %s376, 1
    %378 = vsyncpa [#allocation5], 1

</llo_original>
